<compile_context>
chip_gen: v5e
topology: v5e:2x2
jax: 0.10.0
libtpu: 0.0.40
codegen_flags: <defaults>
</compile_context>

<pallas_src>
import functools

import jax
import jax.numpy as jnp
from jax.experimental import pallas as pl
from jax.experimental.pallas import tpu as pltpu


def _round_up(v, m):
    return (v + m - 1) // m * m


def gcn_fused_kernel(a_ref, x_ref, w_ref, p_ref, o_ref, xc_ref,
                     *, n_real: int, eps: float):
    """One grid step == one GCN layer.

    a_ref : (N_pad, N_pad) bf16   normalized adjacency, VMEM-resident (const block)
    x_ref : (N_pad, Cmax)  f32    padded input features, VMEM-resident
    w_ref : (1, Cmax, Cmax) f32   this layer's (padded) weight
    p_ref : (1, 8, Cmax)   f32    row0=bias, row1=gamma, row2=beta (padded w/ 0)
    o_ref : (N_pad, Cmax)  f32    final (padded) output, written back once
    xc_ref: (N_pad, Cmax)  f32    VMEM scratch carrying activations across layers
    """
    layer = pl.program_id(0)
    num_layers = pl.num_programs(0)

    @pl.when(layer == 0)
    def _():
        xc_ref[...] = x_ref[...]

    x = xc_ref[...]                       # (N_pad, Cmax) f32
    w = w_ref[0]                          # (Cmax, Cmax)  f32
    p = p_ref[0]                          # (8, Cmax)     f32
    bias, gamma, beta = p[0:1, :], p[1:2, :], p[2:3, :]

    # Linear transform once per layer (small, keep f32).
    xw = jnp.dot(x, w, preferred_element_type=jnp.float32)

    # Neighborhood aggregation on the MXU: bf16 inputs, f32 accumulation.
    h = jnp.dot(a_ref[...], xw.astype(jnp.bfloat16),
                preferred_element_type=jnp.float32) + bias

    # BatchNorm1d over real node rows (training-mode batch stats, biased var).
    row_ids = jax.lax.broadcasted_iota(jnp.int32, (h.shape[0], 1), 0)
    rmask = row_ids < n_real
    hm = jnp.where(rmask, h, 0.0)
    inv_n = 1.0 / float(n_real)
    mean = jnp.sum(hm, axis=0, keepdims=True) * inv_n
    ex2 = jnp.sum(hm * hm, axis=0, keepdims=True) * inv_n
    var = ex2 - mean * mean
    y = gamma * (h - mean) * jax.lax.rsqrt(var + eps) + beta

    # ReLU on all layers except the last one.
    not_last = layer < num_layers - 1
    y = jnp.where(not_last, jnp.maximum(y, 0.0), y)
    # Keep padded node rows exactly zero so they never pollute the next layer.
    y = jnp.where(rmask, y, 0.0)

    xc_ref[...] = y
    o_ref[...] = y                        # constant block index -> one HBM writeback


def _vmem_limit_bytes(n_pad, cmax, num_layers):
    a_bytes = n_pad * n_pad * 2                       # bf16 A_hat, resident
    resident = 3 * n_pad * cmax * 4                   # x input + output + scratch
    per_step = 2 * (cmax * cmax * 4 + 8 * cmax * 4)   # double-buffered W + params
    est = int(1.25 * (a_bytes + resident + per_step)) + (1 << 20)
    # Budget against v7x's 64 MiB physical VMEM (leave headroom), floor 2 MiB.
    return max(min(est, 48 * 1024 * 1024), 2 * 1024 * 1024)


def gcn_fused_forward(x_pad, a_bf16, w_stack, p_stack, *, n_real, eps=1e-5):
    n_pad, cmax = x_pad.shape
    num_layers = w_stack.shape[0]
    kernel = functools.partial(gcn_fused_kernel, n_real=n_real, eps=eps)

    grid_spec = pltpu.PrefetchScalarGridSpec(
        num_scalar_prefetch=0,
        grid=(num_layers,),
        in_specs=[
            pl.BlockSpec((n_pad, n_pad), lambda l: (0, 0)),       # A_hat, resident
            pl.BlockSpec((n_pad, cmax), lambda l: (0, 0)),        # X, resident
            pl.BlockSpec((1, cmax, cmax), lambda l: (l, 0, 0)),   # W per layer
            pl.BlockSpec((1, 8, cmax), lambda l: (l, 0, 0)),      # bias/gamma/beta
        ],
        out_specs=pl.BlockSpec((n_pad, cmax), lambda l: (0, 0)),
        scratch_shapes=[pltpu.VMEM((n_pad, cmax), jnp.float32)],
    )
    return pl.pallas_call(
        kernel,
        out_shape=jax.ShapeDtypeStruct((n_pad, cmax), jnp.float32),
        grid_spec=grid_spec,
        compiler_params=pltpu.CompilerParams(
            dimension_semantics=("arbitrary",),   # layers are sequentially dependent
            vmem_limit_bytes=_vmem_limit_bytes(n_pad, cmax, num_layers),
        ),
    )(a_bf16, x_pad, w_stack, p_stack)


def normalized_adjacency(edge_index, num_nodes):
    """Dense D^{-1/2}(A + I)D^{-1/2}, matching torch_geometric gcn_norm."""
    src = edge_index[0]
    dst = edge_index[1]
    loop = jnp.arange(num_nodes, dtype=edge_index.dtype)
    src = jnp.concatenate([src, loop])
    dst = jnp.concatenate([dst, loop])
    # A[i, j] = 1 iff there is an edge j -> i (message from j to i).
    a = jnp.zeros((num_nodes, num_nodes), jnp.float32).at[dst, src].add(1.0)
    deg = a.sum(axis=1)                      # in-degree incl. self-loop
    dinv = jnp.where(deg > 0, 1.0 / jnp.sqrt(deg), 0.0)
    return dinv[:, None] * a * dinv[None, :]


class GCNPallas:
    """Forward-only replica of the PyTorch GCN module (conv->bn->relu x2, conv->bn)."""

    def __init__(self, in_channels, hidden_channels, out_channels, key):
        dims = [(in_channels, hidden_channels),
                (hidden_channels, hidden_channels * 2),
                (hidden_channels * 2, out_channels)]
        self.in_channels = in_channels
        self.out_channels = out_channels
        self.num_layers = len(dims)
        # Uniform padded channel width (multiple of 128) for all layers.
        cmax = _round_up(max(d for pair in dims for d in pair), 128)
        self.cmax = cmax

        keys = jax.random.split(key, 9)
        w_stack, p_stack = [], []
        for i, (cin, cout) in enumerate(dims):
            w = jax.random.normal(keys[3 * i], (cin, cout), jnp.float32) * 0.2
            b = jax.random.normal(keys[3 * i + 1], (cout,), jnp.float32) * 0.05
            gamma = 1.0 + 0.1 * jax.random.normal(keys[3 * i + 2], (cout,),
                                                  jnp.float32)
            beta = jnp.linspace(-0.05, 0.05, cout, dtype=jnp.float32)
            w_pad = jnp.zeros((cmax, cmax), jnp.float32).at[:cin, :cout].set(w)
            p_pad = (jnp.zeros((8, cmax), jnp.float32)
                     .at[0, :cout].set(b)
                     .at[1, :cout].set(gamma)
                     .at[2, :cout].set(beta))
            w_stack.append(w_pad)
            p_stack.append(p_pad)
        self.w_stack = jnp.stack(w_stack)      # (L, Cmax, Cmax) f32
        self.p_stack = jnp.stack(p_stack)      # (L, 8, Cmax)    f32

    def __call__(self, x, edge_index):
        n = x.shape[0]
        n_pad = _round_up(n, 16)               # bf16 sublane-friendly node padding
        a = normalized_adjacency(edge_index, n)
        a_pad = jnp.zeros((n_pad, n_pad), jnp.float32).at[:n, :n].set(a)
        a_bf16 = a_pad.astype(jnp.bfloat16)    # halve HBM traffic of the big operand
        x_pad = (jnp.zeros((n_pad, self.cmax), jnp.float32)
                 .at[:n, :x.shape[1]].set(x))
        out_pad = gcn_fused_forward(x_pad, a_bf16, self.w_stack, self.p_stack,
                                    n_real=n)
        return out_pad[:n, :self.out_channels]


if __name__ == "__main__":
    N = 16              # number of graph nodes
    IN_C = 4
    HID_C = 8
    OUT_C = 4

    key = jax.random.PRNGKey(0)
    k_x, k_params = jax.random.split(key)

    # Node features [N, IN_C].
    x = jax.random.normal(k_x, (N, IN_C), jnp.float32)

    # Deterministic small graph: bidirectional ring over N nodes.
    src = jnp.arange(N, dtype=jnp.int32)
    dst = (src + 1) % N
    edge_index = jnp.stack([
        jnp.concatenate([src, dst]),
        jnp.concatenate([dst, src]),
    ], axis=0)  # [2, 2N]

    model = GCNPallas(IN_C, HID_C, OUT_C, k_params)
    out = model(x, edge_index)
    out = jax.block_until_ready(out)

    assert out.shape == (N, OUT_C), out.shape
    assert jnp.all(jnp.isfinite(out))
    print("KERNEL_OK")
</pallas_src>

<mosaic_0001>
module attributes {stable_mosaic.version = 11 : i64} {
  func.func @gcn_fused_kernel(%arg0: i32, %arg1: memref<16x16xbf16, #tpu.memory_space<vmem>>, %arg2: memref<16x128xf32, #tpu.memory_space<vmem>>, %arg3: memref<1x128x128xf32, #tpu.memory_space<vmem>>, %arg4: memref<1x8x128xf32, #tpu.memory_space<vmem>>, %arg5: memref<16x128xf32, #tpu.memory_space<vmem>>, %arg6: memref<16x128xf32, #tpu.memory_space<vmem>>) attributes {dimension_semantics = [#tpu.dimension_semantics<arbitrary>], iteration_bounds = array<i64: 3>, scalar_prefetch = 0 : i64, scratch_operands = 1 : i64, tpu.core_type = #tpu.core_type<tc>, window_params = [{pipeline_mode = #tpu.pipeline_mode<synchronous>, transform_indices = @transform_0, window_bounds = array<i64: 16, 16>}, {pipeline_mode = #tpu.pipeline_mode<synchronous>, transform_indices = @transform_1, window_bounds = array<i64: 16, 128>}, {transform_indices = @transform_2, window_bounds = array<i64: 1, 128, 128>}, {transform_indices = @transform_3, window_bounds = array<i64: 1, 8, 128>}, {pipeline_mode = #tpu.pipeline_mode<synchronous>, transform_indices = @transform_4, window_bounds = array<i64: 16, 128>}]} {
    %c0_i32 = arith.constant 0 : i32
    %0 = arith.cmpi eq, %arg0, %c0_i32 : i32
    %1 = arith.extui %0 : i1 to i32
    %c0_i32_0 = arith.constant 0 : i32
    %2 = arith.cmpi ne, %1, %c0_i32_0 : i32
    scf.if %2 {
      %c0_23 = arith.constant 0 : index
      %c0_24 = arith.constant 0 : index
      %56 = vector.load %arg2[%c0_23, %c0_24] : memref<16x128xf32, #tpu.memory_space<vmem>>, vector<16x128xf32>
      %c0_25 = arith.constant 0 : index
      %c0_26 = arith.constant 0 : index
      %57 = vector.load %arg6[%c0_25, %c0_26] : memref<16x128xf32, #tpu.memory_space<vmem>>, vector<16x128xf32>
      tpu.vector_store %arg6[%c0_25, %c0_26], %56 {strides = array<i32>} : memref<16x128xf32, #tpu.memory_space<vmem>>, vector<16x128xf32>,
    } else {
    }
    %c0 = arith.constant 0 : index
    %c0_1 = arith.constant 0 : index
    %3 = vector.load %arg6[%c0, %c0_1] : memref<16x128xf32, #tpu.memory_space<vmem>>, vector<16x128xf32>
    %c0_2 = arith.constant 0 : index
    %c0_3 = arith.constant 0 : index
    %c0_4 = arith.constant 0 : index
    %4 = vector.load %arg3[%c0_2, %c0_3, %c0_4] : memref<1x128x128xf32, #tpu.memory_space<vmem>>, vector<1x128x128xf32>
    %5 = vector.shape_cast %4 : vector<1x128x128xf32> to vector<128x128xf32>
    %c0_5 = arith.constant 0 : index
    %c0_6 = arith.constant 0 : index
    %c0_7 = arith.constant 0 : index
    %6 = vector.load %arg4[%c0_5, %c0_6, %c0_7] : memref<1x8x128xf32, #tpu.memory_space<vmem>>, vector<1x8x128xf32>
    %7 = vector.shape_cast %6 : vector<1x8x128xf32> to vector<8x128xf32>
    %8 = vector.extract_strided_slice %7 {offsets = [0, 0], sizes = [1, 128], strides = [1, 1]} : vector<8x128xf32> to vector<1x128xf32>
    %9 = vector.extract_strided_slice %7 {offsets = [1, 0], sizes = [1, 128], strides = [1, 1]} : vector<8x128xf32> to vector<1x128xf32>
    %10 = vector.extract_strided_slice %7 {offsets = [2, 0], sizes = [1, 128], strides = [1, 1]} : vector<8x128xf32> to vector<1x128xf32>
    %cst = arith.constant dense<0.000000e+00> : vector<16x128xf32>
    %11 = tpu.matmul %3, %5, %cst {dimension_numbers = #tpu.dot_dimension_numbers<[1], [0], [0], [1], [0, 0, 1, 1], [], []>} : vector<16x128xf32>, vector<128x128xf32>, vector<16x128xf32> -> vector<16x128xf32>
    %c0_8 = arith.constant 0 : index
    %c0_9 = arith.constant 0 : index
    %12 = vector.load %arg1[%c0_8, %c0_9] : memref<16x16xbf16, #tpu.memory_space<vmem>>, vector<16x16xbf16>
    %13 = arith.truncf %11 : vector<16x128xf32> to vector<16x128xbf16>
    %cst_10 = arith.constant dense<0.000000e+00> : vector<16x128xf32>
    %14 = tpu.matmul %12, %13, %cst_10 {dimension_numbers = #tpu.dot_dimension_numbers<[1], [0], [0], [1], [0, 0, 1, 1], [], []>} : vector<16x16xbf16>, vector<16x128xbf16>, vector<16x128xf32> -> vector<16x128xf32>
    %15 = vector.broadcast %8 : vector<1x128xf32> to vector<16x128xf32>
    %16 = arith.addf %14, %15 : vector<16x128xf32>
    %17 = tpu.iota {dimensions = array<i32: 0>} : vector<16x1xi32>
    %c16_i32 = arith.constant 16 : i32
    %18 = vector.broadcast %c16_i32 : i32 to vector<16x1xi32>
    %19 = arith.cmpi slt, %17, %18 : vector<16x1xi32>
    %cst_11 = arith.constant 0.000000e+00 : f32
    %20 = vector.shape_cast %19 : vector<16x1xi1> to vector<16x1xi1>
    %21 = vector.broadcast %20 : vector<16x1xi1> to vector<16x128xi1>
    %22 = vector.broadcast %cst_11 : f32 to vector<16x128xf32>
    %23 = arith.select %21, %16, %22 : vector<16x128xi1>, vector<16x128xf32>
    %cst_12 = arith.constant dense<0.000000e+00> : vector<128xf32>
    %24 = vector.multi_reduction <add>, %23, %cst_12 [0] : vector<16x128xf32> to vector<128xf32>
    %25 = vector.shape_cast %24 : vector<128xf32> to vector<1x128xf32>
    %cst_13 = arith.constant 6.250000e-02 : f32
    %26 = vector.broadcast %cst_13 : f32 to vector<1x128xf32>
    %27 = arith.mulf %25, %26 : vector<1x128xf32>
    %28 = arith.mulf %23, %23 : vector<16x128xf32>
    %cst_14 = arith.constant dense<0.000000e+00> : vector<128xf32>
    %29 = vector.multi_reduction <add>, %28, %cst_14 [0] : vector<16x128xf32> to vector<128xf32>
    %30 = vector.shape_cast %29 : vector<128xf32> to vector<1x128xf32>
    %cst_15 = arith.constant 6.250000e-02 : f32
    %31 = vector.broadcast %cst_15 : f32 to vector<1x128xf32>
    %32 = arith.mulf %30, %31 : vector<1x128xf32>
    %33 = arith.mulf %27, %27 : vector<1x128xf32>
    %34 = arith.subf %32, %33 : vector<1x128xf32>
    %35 = vector.broadcast %27 : vector<1x128xf32> to vector<16x128xf32>
    %36 = arith.subf %16, %35 : vector<16x128xf32>
    %37 = vector.broadcast %9 : vector<1x128xf32> to vector<16x128xf32>
    %38 = arith.mulf %37, %36 : vector<16x128xf32>
    %cst_16 = arith.constant 9.99999974E-6 : f32
    %39 = vector.broadcast %cst_16 : f32 to vector<1x128xf32>
    %40 = arith.addf %34, %39 : vector<1x128xf32>
    %41 = math.rsqrt %40 : vector<1x128xf32>
    %42 = vector.broadcast %41 : vector<1x128xf32> to vector<16x128xf32>
    %43 = arith.mulf %38, %42 : vector<16x128xf32>
    %44 = vector.broadcast %10 : vector<1x128xf32> to vector<16x128xf32>
    %45 = arith.addf %43, %44 : vector<16x128xf32>
    %c2_i32 = arith.constant 2 : i32
    %46 = arith.cmpi slt, %arg0, %c2_i32 : i32
    %cst_17 = arith.constant 0.000000e+00 : f32
    %47 = vector.broadcast %cst_17 : f32 to vector<16x128xf32>
    %48 = arith.maximumf %45, %47 : vector<16x128xf32>
    %49 = arith.select %46, %48, %45 : vector<16x128xf32>
    %cst_18 = arith.constant 0.000000e+00 : f32
    %50 = vector.shape_cast %19 : vector<16x1xi1> to vector<16x1xi1>
    %51 = vector.broadcast %50 : vector<16x1xi1> to vector<16x128xi1>
    %52 = vector.broadcast %cst_18 : f32 to vector<16x128xf32>
    %53 = arith.select %51, %49, %52 : vector<16x128xi1>, vector<16x128xf32>
    %c0_19 = arith.constant 0 : index
    %c0_20 = arith.constant 0 : index
    %54 = vector.load %arg6[%c0_19, %c0_20] : memref<16x128xf32, #tpu.memory_space<vmem>>, vector<16x128xf32>
    tpu.vector_store %arg6[%c0_19, %c0_20], %53 {strides = array<i32>} : memref<16x128xf32, #tpu.memory_space<vmem>>, vector<16x128xf32>,
    %c0_21 = arith.constant 0 : index
    %c0_22 = arith.constant 0 : index
    %55 = vector.load %arg5[%c0_21, %c0_22] : memref<16x128xf32, #tpu.memory_space<vmem>>, vector<16x128xf32>
    tpu.vector_store %arg5[%c0_21, %c0_22], %53 {strides = array<i32>} : memref<16x128xf32, #tpu.memory_space<vmem>>, vector<16x128xf32>,
    return
  }
  func.func @transform_0(%arg0: i32) -> (i32, i32) {
    %c0_i32 = arith.constant 0 : i32
    %c0_i32_0 = arith.constant 0 : i32
    %c0_i32_1 = arith.constant 0 : i32
    return %c0_i32, %c0_i32_0 : i32, i32
  }
  func.func @transform_1(%arg0: i32) -> (i32, i32) {
    %c0_i32 = arith.constant 0 : i32
    %c0_i32_0 = arith.constant 0 : i32
    %c0_i32_1 = arith.constant 0 : i32
    return %c0_i32, %c0_i32_0 : i32, i32
  }
  func.func @transform_2(%arg0: i32) -> (i32, i32, i32) {
    %c0_i32 = arith.constant 0 : i32
    %c0_i32_0 = arith.constant 0 : i32
    %c0_i32_1 = arith.constant 0 : i32
    return %arg0, %c0_i32, %c0_i32_0 : i32, i32, i32
  }
  func.func @transform_3(%arg0: i32) -> (i32, i32, i32) {
    %c0_i32 = arith.constant 0 : i32
    %c0_i32_0 = arith.constant 0 : i32
    %c0_i32_1 = arith.constant 0 : i32
    return %arg0, %c0_i32, %c0_i32_0 : i32, i32, i32
  }
  func.func @transform_4(%arg0: i32) -> (i32, i32) {
    %c0_i32 = arith.constant 0 : i32
    %c0_i32_0 = arith.constant 0 : i32
    %c0_i32_1 = arith.constant 0 : i32
    return %c0_i32, %c0_i32_0 : i32, i32
  }
}

</mosaic_0001>

<llo_original>
// kernel: tpu_custom_call.1
$region0: #{tpu_custom_call.1}
  #allocation0 [shape = 'u32[]', space=smem, size = 0x4, offset = 0x4, fixed_abs, tag = 'smem constant byte address 0x4 - core index']
  #allocation1 [shape = 'u32[72,128]{1,0:T(1,128)}', space=vmem, size = 0x9000, scoped, tag = 'internal scratch']
  #allocation2 [shape = 'f32[16,128]{1,0:T(8,128)}', space=vmem, size = 0x2000, scoped, tag = 'scratch operand']
  %s0 = inlined_call_operand.hbm [shape: bf16[16,16], index: 0, kind: input, shape index: {}]
  %s1 = inlined_call_operand.hbm [shape: f32[16,128], index: 1, kind: input, shape index: {}]
  %s2 = inlined_call_operand.hbm [shape: f32[3,128,128], index: 2, kind: input, shape index: {}]
  %s3 = inlined_call_operand.hbm [shape: f32[3,8,128], index: 3, kind: input, shape index: {}]
  %s4 = inlined_call_operand.hbm [shape: f32[16,128], index: 4, kind: output, shape index: {}]
  %s5 = sld [smem:[#allocation0]]
  $region69: #{tpu_custom_call.1} parent=0
    _
  %s7 = ssub.s32 1, %s5
  %s8 = scalar_select 0, %s7, %s5
  $region1: #{tpu_custom_call.1} parent=0
    #allocation3 [shape = 'u8[4096]{0}', space=vmem, size = 0x1000, scoped, tag = 'input window, operand 0, single buffered']
    #allocation4 [shape = 's32[2]{0}', space=sflag, size = 0x8, scoped, tag = 'scoped memory for tpu_custom_call.1']
    #allocation5 [shape = 's32[2]{0}', space=sflag, size = 0x8, scoped, tag = 'scoped memory for tpu_custom_call.1']
    #allocation6 [shape = 'u8[8192]{0}', space=vmem, size = 0x2000, scoped, tag = 'input window, operand 1, single buffered']
    #allocation7 [shape = 's32[1]{0}', space=sflag, size = 0x4, scoped, tag = 'scoped memory for tpu_custom_call.1']
    #allocation8 [shape = 'u8[131072]{0}', space=vmem, size = 0x20000, scoped, tag = 'input window, operand 2']
    #allocation9 [shape = 'u8[8192]{0}', space=vmem, size = 0x2000, scoped, tag = 'input window, operand 3']
    #allocation10 [shape = 'u8[8192]{0}', space=vmem, size = 0x2000, scoped, tag = 'output window, operand 0, single buffered']
    %9 = vsyncpa [#allocation4], 0
    %10 = vsyncpa [#allocation7], 0
    %11 = vsyncpa [#allocation5], 0
    loop: start=0, step=1, limit=5
    $region2: #{tpu_custom_call.1} parent=1 // loop_pre_header
      _
    $region3: #{tpu_custom_call.1} parent=1 // loop_header
      %s13 = sphi 0, %s17
      %p14 = scmp.ge.s32.totalorder %s13, 5
      %s21 = sphi 0, %s21
      %s23 = sphi 0, %s21
      %s24 = sphi 0, %s23
      %s38 = sphi 0, %s24
      %s42 = sphi 0, %s42
      %s44 = sphi 0, %s42
      %s45 = sphi 0, %s44
      %s59 = sphi 0, %s45
      %s65 = sphi 0, %s67
      %s68 = sphi 0, %s65
      %s69 = sphi 0, %s68
      %s85 = sphi 0, %s69
      %s91 = sphi 0, %s93
      %s94 = sphi 0, %s91
      %s95 = sphi 0, %s94
      %s111 = sphi 0, %s95
      %s115 = sphi 0, %s115
      %s117 = sphi 0, %s115
      %s118 = sphi 0, %s117
      %s132 = sphi 0, %s118
    $region4: #{tpu_custom_call.1} parent=1 // loop_header_branch
      %16 = sbr.rel (%p14) target = $region8
    $region5: #{tpu_custom_call.1} parent=1 // loop_body
      %s18 = ssub.s32 %s13, 1
      %s19 = ssub.s32 %s13, 2
      %s20 = sadd.s32 %s13, 1
      %s22 = sadd.s32 %s21, 1
      %p25 = scmp.eq.s32.totalorder %s13, 2
      %p26 = scmp.ne.s32.totalorder %s21, %s23
      %p27 = scmp.eq.s32.totalorder %s13, 0
      %p28 = por %p26, %p27
      %p29 = scmp.ne.s32.totalorder %s21, %s23
      %p30 = scmp.eq.s32.totalorder %s18, 2
      %p31 = por %p29, %p30
      %p32 = scmp.ne.s32.totalorder %s23, %s24
      %p33 = scmp.eq.s32.totalorder %s18, 0
      %p34 = por %p32, %p33
      %p35 = scmp.ne.s32.totalorder %s23, %s24
      %p36 = scmp.eq.s32.totalorder %s19, 2
      %p37 = por %p35, %p36
      %p39 = scmp.ne.s32.totalorder %s24, %s38
      %p40 = scmp.eq.s32.totalorder %s19, 0
      %p41 = por %p39, %p40
      %s43 = sadd.s32 %s42, 1
      %p46 = scmp.eq.s32.totalorder %s13, 2
      %p47 = scmp.ne.s32.totalorder %s42, %s44
      %p48 = scmp.eq.s32.totalorder %s13, 0
      %p49 = por %p47, %p48
      %p50 = scmp.ne.s32.totalorder %s42, %s44
      %p51 = scmp.eq.s32.totalorder %s18, 2
      %p52 = por %p50, %p51
      %p53 = scmp.ne.s32.totalorder %s44, %s45
      %p54 = scmp.eq.s32.totalorder %s18, 0
      %p55 = por %p53, %p54
      %p56 = scmp.ne.s32.totalorder %s44, %s45
      %p57 = scmp.eq.s32.totalorder %s19, 2
      %p58 = por %p56, %p57
      %p60 = scmp.ne.s32.totalorder %s45, %s59
      %p61 = scmp.eq.s32.totalorder %s19, 0
      %p62 = por %p60, %p61
      %s63 = ssub.s32 %s13, %s20
      %p64 = scmp.eq.s32.totalorder %s63, 0
      %s66 = sadd.s32 %s65, 1
      %s67 = scalar_select %p64, %s65, %s66
      %p70 = pneg %p64
      %p71 = scmp.eq.s32.totalorder %s13, 2
      %p72 = por %p70, %p71
      %p73 = scmp.ne.s32.totalorder %s65, %s68
      %p74 = scmp.eq.s32.totalorder %s13, 0
      %p75 = por %p73, %p74
      %p76 = scmp.ne.s32.totalorder %s65, %s68
      %p77 = scmp.eq.s32.totalorder %s18, 2
      %p78 = por %p76, %p77
      %p79 = scmp.ne.s32.totalorder %s68, %s69
      %p80 = scmp.eq.s32.totalorder %s18, 0
      %p81 = por %p79, %p80
      %p82 = scmp.ne.s32.totalorder %s68, %s69
      %p83 = scmp.eq.s32.totalorder %s19, 2
      %p84 = por %p82, %p83
      %p86 = scmp.ne.s32.totalorder %s69, %s85
      %p87 = scmp.eq.s32.totalorder %s19, 0
      %p88 = por %p86, %p87
      %s89 = ssub.s32 %s13, %s20
      %p90 = scmp.eq.s32.totalorder %s89, 0
      %s92 = sadd.s32 %s91, 1
      %s93 = scalar_select %p90, %s91, %s92
      %p96 = pneg %p90
      %p97 = scmp.eq.s32.totalorder %s13, 2
      %p98 = por %p96, %p97
      %p99 = scmp.ne.s32.totalorder %s91, %s94
      %p100 = scmp.eq.s32.totalorder %s13, 0
      %p101 = por %p99, %p100
      %p102 = scmp.ne.s32.totalorder %s91, %s94
      %p103 = scmp.eq.s32.totalorder %s18, 2
      %p104 = por %p102, %p103
      %p105 = scmp.ne.s32.totalorder %s94, %s95
      %p106 = scmp.eq.s32.totalorder %s18, 0
      %p107 = por %p105, %p106
      %p108 = scmp.ne.s32.totalorder %s94, %s95
      %p109 = scmp.eq.s32.totalorder %s19, 2
      %p110 = por %p108, %p109
      %p112 = scmp.ne.s32.totalorder %s95, %s111
      %p113 = scmp.eq.s32.totalorder %s19, 0
      %p114 = por %p112, %p113
      %s116 = sadd.s32 %s115, 1
      %p119 = scmp.eq.s32.totalorder %s13, 2
      %p120 = scmp.ne.s32.totalorder %s115, %s117
      %p121 = scmp.eq.s32.totalorder %s13, 0
      %p122 = por %p120, %p121
      %p123 = scmp.ne.s32.totalorder %s115, %s117
      %p124 = scmp.eq.s32.totalorder %s18, 2
      %p125 = por %p123, %p124
      %p126 = scmp.ne.s32.totalorder %s117, %s118
      %p127 = scmp.eq.s32.totalorder %s18, 0
      %p128 = por %p126, %p127
      %p129 = scmp.ne.s32.totalorder %s117, %s118
      %p130 = scmp.eq.s32.totalorder %s19, 2
      %p131 = por %p129, %p130
      %p133 = scmp.ne.s32.totalorder %s118, %s132
      %p134 = scmp.eq.s32.totalorder %s19, 0
      %p135 = por %p133, %p134
      %p136 = scmp.le.s32.totalorder 1, %s13
      %p137 = scmp.lt.s32.totalorder %s13, 4
      %p138 = pnand %p136, %p137
      %p139 = pneg %p138
      // Predicated region
      $region9: #{tpu_custom_call.1} parent=5 // pred_check
        _
      $region10: #{tpu_custom_call.1} parent=5 // pred_check_branch
        %141 = sbr.rel (%p138) target = $region12
      $region11: #{tpu_custom_call.1} parent=5 // pred_region
        %s142 = ssub.s32 %s13, 1
        // Predicated region
        $region13: #{tpu_custom_call.1} parent=11 // pred_check
          %p143 = pneg %p34
        $region14: #{tpu_custom_call.1} parent=11 // pred_check_branch
          %145 = sbr.rel (%p143) target = $region16
        $region15: #{tpu_custom_call.1} parent=11 // pred_region
          %147 = vsyncadd [#allocation4], 0
          %s148 = sshll.u32 %s0, 4
          %s149 = int_to_ptr.hbm [resolvable:$true] %s148
          %s150 = sshll.u32 [#allocation3], 4
          %s151 = int_to_ptr.vmem [resolvable:$true] %s150
          %156 = dma.hbm_to_vmem [thread:$0]  %s149, 128, %s151, [#allocation4], 64, 64, 4
        $region16: #{tpu_custom_call.1} parent=11 // pred_fallthru
          _
        // Predicated region
        $region17: #{tpu_custom_call.1} parent=11 // pred_check
          %p157 = pneg %p55
        $region18: #{tpu_custom_call.1} parent=11 // pred_check_branch
          %159 = sbr.rel (%p157) target = $region20
        $region19: #{tpu_custom_call.1} parent=11 // pred_region
          %161 = vsyncadd [#allocation7], 0
          %s162 = sshll.u32 %s1, 4
          %s163 = int_to_ptr.hbm [resolvable:$true] %s162
          %s164 = sshll.u32 [#allocation6], 4
          %s165 = int_to_ptr.vmem [resolvable:$true] %s164
          %170 = dma.hbm_to_vmem [thread:$0]  %s163, 256, %s165, [#allocation7], 128, 128, 8
        $region20: #{tpu_custom_call.1} parent=11 // pred_fallthru
          _
      $region12: #{tpu_custom_call.1} parent=5 // pred_fallthru
        _
      %p171 = scmp.lt.s32.totalorder %s13, 3
      // Predicated region
      $region21: #{tpu_custom_call.1} parent=5 // pred_check
        %p172 = pneg %p171
      $region22: #{tpu_custom_call.1} parent=5 // pred_check_branch
        %174 = sbr.rel (%p172) target = $region24
      $region23: #{tpu_custom_call.1} parent=5 // pred_region
        // Predicated region
        $region25: #{tpu_custom_call.1} parent=23 // pred_check
          %p175 = pneg %p75
        $region26: #{tpu_custom_call.1} parent=23 // pred_check_branch
          %177 = sbr.rel (%p175) target = $region28
        $region27: #{tpu_custom_call.1} parent=23 // pred_region
          %s178 = sand.u32 %s13, 1
          %s179 = scalar_lea.sflag [#allocation4], %s178
          %s180 = sand.u32 %s65, 1
          %s181 = smul.addr %s180, 128
          %s182 = scalar_lea.vmem [#allocation8], %s181
          %184 = vsyncadd %s179, 0
          %s185 = smul.addr %s13, 16
          %s186 = smul.addr %s185, 8
          %s187 = scalar_lea.hbm %s2, %s186
          %s188 = sshll.u32 %s187, 4
          %s189 = int_to_ptr.hbm [resolvable:$true] %s188
          %s190 = sshll.u32 %s182, 4
          %s191 = int_to_ptr.vmem [resolvable:$true] %s190
          %196 = dma.hbm_to_vmem [thread:$0]  %s189, 2048, %s191, %s179, 128, 128, 8
        $region28: #{tpu_custom_call.1} parent=23 // pred_fallthru
          _
        // Predicated region
        $region29: #{tpu_custom_call.1} parent=23 // pred_check
          %p197 = pneg %p101
        $region30: #{tpu_custom_call.1} parent=23 // pred_check_branch
          %199 = sbr.rel (%p197) target = $region32
        $region31: #{tpu_custom_call.1} parent=23 // pred_region
          %s200 = sand.u32 %s13, 1
          %s201 = scalar_lea.sflag [#allocation4], %s200
          %s202 = sand.u32 %s91, 1
          %s203 = smul.addr %s202, 8
          %s204 = scalar_lea.vmem [#allocation9], %s203
          %206 = vsyncadd %s201, 0
          %s207 = smul.addr %s13, 8
          %s208 = scalar_lea.hbm %s3, %s207
          %s210 = sshll.u32 %s208, 4
          %s211 = int_to_ptr.hbm [resolvable:$true] %s210
          %s212 = sshll.u32 %s204, 4
          %s213 = int_to_ptr.vmem [resolvable:$true] %s212
          %215 = dma.hbm_to_vmem [thread:$0]  %s211, 128, %s213, %s201
        $region32: #{tpu_custom_call.1} parent=23 // pred_fallthru
          _
      $region24: #{tpu_custom_call.1} parent=5 // pred_fallthru
        _
      %p216 = scmp.le.s32.totalorder 1, %s13
      %p217 = scmp.lt.s32.totalorder %s13, 4
      %p218 = pnand %p216, %p217
      %p219 = pneg %p218
      // Predicated region
      $region33: #{tpu_custom_call.1} parent=5 // pred_check
        _
      $region34: #{tpu_custom_call.1} parent=5 // pred_check_branch
        %221 = sbr.rel (%p218) target = $region36
      $region35: #{tpu_custom_call.1} parent=5 // pred_region
        %s222 = ssub.s32 %s13, 1
        // Predicated region
        $region37: #{tpu_custom_call.1} parent=35 // pred_check
          %p223 = pneg %p34
        $region38: #{tpu_custom_call.1} parent=35 // pred_check_branch
          %225 = sbr.rel (%p223) target = $region40
        $region39: #{tpu_custom_call.1} parent=35 // pred_region
          %227 = dma.done [#allocation4], 128
        $region40: #{tpu_custom_call.1} parent=35 // pred_fallthru
          _
        // Predicated region
        $region41: #{tpu_custom_call.1} parent=35 // pred_check
          %p228 = pneg %p55
        $region42: #{tpu_custom_call.1} parent=35 // pred_check_branch
          %230 = sbr.rel (%p228) target = $region44
        $region43: #{tpu_custom_call.1} parent=35 // pred_region
          %232 = dma.done [#allocation7], 256
        $region44: #{tpu_custom_call.1} parent=35 // pred_fallthru
          _
        %s233 = sand.u32 %s18, 1
        %s234 = scalar_lea.sflag [#allocation4], %s233
        %s235 = sand.u32 %s68, 1
        %s236 = smul.addr %s235, 128
        %s237 = scalar_lea.vmem [#allocation8], %s236
        // Predicated region
        $region45: #{tpu_custom_call.1} parent=35 // pred_check
          %p238 = pneg %p81
        $region46: #{tpu_custom_call.1} parent=35 // pred_check_branch
          %240 = sbr.rel (%p238) target = $region48
        $region47: #{tpu_custom_call.1} parent=35 // pred_region
          %242 = dma.done %s234, 2048
        $region48: #{tpu_custom_call.1} parent=35 // pred_fallthru
          _
        %s243 = sand.u32 %s18, 1
        %s244 = scalar_lea.sflag [#allocation4], %s243
        %s245 = sand.u32 %s94, 1
        %s246 = smul.addr %s245, 8
        %s247 = scalar_lea.vmem [#allocation9], %s246
        // Predicated region
        $region49: #{tpu_custom_call.1} parent=35 // pred_check
          %p248 = pneg %p107
        $region50: #{tpu_custom_call.1} parent=35 // pred_check_branch
          %250 = sbr.rel (%p248) target = $region52
        $region51: #{tpu_custom_call.1} parent=35 // pred_region
          %252 = dma.done %s244, 128
        $region52: #{tpu_custom_call.1} parent=35 // pred_fallthru
          _
        %p253 = pneg %p34
        %p254 = pneg %p31
        %p255 = pneg %p55
        %p256 = pneg %p52
        %s257 = sand.u32 %s18, 1
        %s258 = scalar_lea.sflag [#allocation4], %s257
        %s259 = sand.u32 %s68, 1
        %s260 = smul.addr %s259, 128
        %s261 = scalar_lea.vmem [#allocation8], %s260
        %p262 = pneg %p81
        %p263 = pneg %p78
        %s264 = sand.u32 %s18, 1
        %s265 = scalar_lea.sflag [#allocation4], %s264
        %s266 = sand.u32 %s94, 1
        %s267 = smul.addr %s266, 8
        %s268 = scalar_lea.vmem [#allocation9], %s267
        %p269 = pneg %p107
        %p270 = pneg %p104
        %p271 = pneg %p128
        %p272 = pneg %p125
        %p274 = scmp.eq.s32.totalorder %s18, 0
        // Predicated region
        $region53: #{tpu_custom_call.1} parent=35 // pred_check
          %p275 = pneg %p274
        $region54: #{tpu_custom_call.1} parent=35 // pred_check_branch
          %277 = sbr.rel (%p275) target = $region56
        $region55: #{tpu_custom_call.1} parent=35 // pred_region
          %v278 = vld [vmem:[#allocation6] sm:$0xff]
          %v279 = vld [vmem:[#allocation6 + $0x8] sm:$0xff]
          %280 = vst [vmem:[#allocation2] sm:$0xff] %v278
          %281 = vst [vmem:[#allocation2 + $0x8] sm:$0xff] %v279
        $region56: #{tpu_custom_call.1} parent=35 // pred_fallthru
          _
        %v282 = vld [vmem:[#allocation2] sm:$0xff]
        %v283 = vld [vmem:[#allocation2 + $0x8] sm:$0xff]
        %v284 = vld [vmem:[%s237] sm:$0xff]
        %v285 = vld [vmem:[%s237 + $0x8] sm:$0xff]
        %v286 = vld [vmem:[%s237 + $0x10] sm:$0xff]
        %v287 = vld [vmem:[%s237 + $0x18] sm:$0xff]
        %v288 = vld [vmem:[%s237 + $0x20] sm:$0xff]
        %v289 = vld [vmem:[%s237 + $0x28] sm:$0xff]
        %v290 = vld [vmem:[%s237 + $0x30] sm:$0xff]
        %v291 = vld [vmem:[%s237 + $0x38] sm:$0xff]
        %v292 = vld [vmem:[%s237 + $0x40] sm:$0xff]
        %v293 = vld [vmem:[%s237 + $0x48] sm:$0xff]
        %v294 = vld [vmem:[%s237 + $0x50] sm:$0xff]
        %v295 = vld [vmem:[%s237 + $0x58] sm:$0xff]
        %v296 = vld [vmem:[%s237 + $0x60] sm:$0xff]
        %v297 = vld [vmem:[%s237 + $0x68] sm:$0xff]
        %v298 = vld [vmem:[%s237 + $0x70] sm:$0xff]
        %v299 = vld [vmem:[%s237 + $0x78] sm:$0xff]
        %v300 = vld [vmem:[%s247] sm:$0xff]
        %301 = vmatpush.msra.mxu0 %v299
        %302 = vmatpush.msra.mxu0 %v298
        %303 = vmatpush.msra.mxu0 %v297
        %304 = vmatpush.msra.mxu0 %v296
        %305 = vmatpush.msra.mxu0 %v295
        %306 = vmatpush.msra.mxu0 %v294
        %307 = vmatpush.msra.mxu0 %v293
        %308 = vmatpush.msra.mxu0 %v292
        %309 = vmatpush.msra.mxu0 %v291
        %310 = vmatpush.msra.mxu0 %v290
        %311 = vmatpush.msra.mxu0 %v289
        %312 = vmatpush.msra.mxu0 %v288
        %313 = vmatpush.msra.mxu0 %v287
        %314 = vmatpush.msra.mxu0 %v286
        %315 = vmatpush.msra.mxu0 %v285
        %316 = vmatpush.msra.mxu0 %v284
        %317 = vmatmul.f32.gmra.mxu0 %v282
        %v318 = vpop.f32.mrf.mxu0
        %v319 = vadd.f32 0.0, %v318
        %320 = vmatmul.f32.gmra.mxu0 %v283
        %v321 = vpop.f32.mrf.mxu0
        %v322 = vadd.f32 0.0, %v321
        %323 = vdwg.mxu0
        %v324 = vld [vmem:[#allocation3] sm:$0xf]
        %v325 = vld [vmem:[#allocation3 + $0x4] sm:$0xf]
        %v326 = vpack.c.bf16 %v322, %v319
        %v327 = vperm.slane %v300, 0
        %v330 = vunpack.c.l.b16 %v324
        %v331 = vunpack.c.l.b16 %v325
        %v332 = vpack.c.b16 %v331, %v330
        %vm333 = vcmask 130048
        %v335 = vsel %vm333, %v332, 0
        %337 = vmatpush.bf16.msra.mxu0 0
        %338 = vmatpush.bf16.msra.mxu0 0
        %339 = vmatpush.bf16.msra.mxu0 0
        %340 = vmatpush.bf16.msra.mxu0 0
        %341 = vmatpush.bf16.msra.mxu0 0
        %342 = vmatpush.bf16.msra.mxu0 0
        %343 = vmatpush.bf16.msra.mxu0 0
        %344 = vmatpush.bf16.msra.mxu0 %v326
        %345 = vmatmul.bf16.gmra.mxu0 %v335
        %v346 = vpop.f32.mrf.mxu0
        %v347 = vadd.f32 %v327, %v346
        %v348 = vpop.f32.mrf.mxu0
        %v349 = vadd.f32 %v327, %v348
        %350 = vdwg.mxu0
        %v351 = vlaneseq
        %v352 = vshrl.u32 %v351, 7
        %v353 = vadd.s32 %v352, 8
        %vm354 = vcmp.lt.s32.totalorder %v352, 16
        %vm355 = vcmp.lt.s32.totalorder %v353, 16
        %v356 = vsel %vm354, 1, 0
        %v357 = vsel %vm355, 1, 0
        %vm358 = vcmp.eq.s32.totalorder %v356, 1
        %vm359 = vcmp.eq.s32.totalorder %v357, 1
        %v360 = vsel %vm358, %v347, 0.0
        %v361 = vsel %vm359, %v349, 0.0
        %v362 = vadd.f32 %v360, %v361
        %v363 = vrot.slane %v362, 4
        %v364 = vadd.f32 %v362, %v363
        %v365 = vrot.slane %v364, 2
        %v366 = vadd.f32 %v364, %v365
        %v367 = vrot.slane %v366, 1
        %v368 = vadd.f32 %v366, %v367
        %v369 = vmul.f32 %v368, 0.0625
        %v370 = vmul.f32 %v360, %v360
        %v371 = vmul.f32 %v361, %v361
        %v372 = vadd.f32 %v370, %v371
        %v373 = vrot.slane %v372, 4
        %v374 = vadd.f32 %v372, %v373
        %v375 = vrot.slane %v374, 2
        %v376 = vadd.f32 %v374, %v375
        %v377 = vrot.slane %v376, 1
        %v378 = vadd.f32 %v376, %v377
        %v379 = vmul.f32 %v378, 0.0625
        %v380 = vmul.f32 %v369, %v369
        %v381 = vsub.f32 %v379, %v380
        %v382 = vsub.f32 %v347, %v369
        %v383 = vsub.f32 %v349, %v369
        %v384 = vperm.slane %v300, 1
        %v385 = vmul.f32 %v384, %v382
        %v386 = vmul.f32 %v384, %v383
        %v387 = vadd.f32 %v381, 1e-05
        %v388 = vrsqrt.pop %v387
        %v389 = vmul.f32 %v388, %v387
        %v390 = vmul.f32 %v389, %v388
        %v391 = vmul.f32 0.5, %v390
        %v392 = vsub.f32 1.5, %v391
        %v393 = vmul.f32 %v388, %v392
        %vm394 = vweird.f32 %v387
        %vm395 = vweird.f32 %v388
        %vm396 = vmor %vm394, %vm395
        %v397 = vsel %vm396, %v388, %v393
        %v398 = vmul.f32 %v385, %v397
        %v399 = vmul.f32 %v386, %v397
        %v400 = vperm.slane %v300, 2
        %v401 = vadd.f32 %v398, %v400
        %v402 = vadd.f32 %v399, %v400
        %p403 = scmp.lt.s32.totalorder %s18, 2
        %v404 = vmax.f32 %v401, 0.0
        %v405 = vmax.f32 %v402, 0.0
        %s406 = scalar_select %p403, 1, 0
        %v407 = vstv %s406
        %vm408 = vcmp.eq.s32.totalorder %v407, 1
        %v409 = vsel %vm408, %v404, %v401
        %v410 = vsel %vm408, %v405, %v402
        %v411 = vsel %vm358, %v409, 0.0
        %v412 = vsel %vm359, %v410, 0.0
        %413 = vst [vmem:[#allocation2] sm:$0xff] %v411
        %414 = vst [vmem:[#allocation2 + $0x8] sm:$0xff] %v412
        %415 = vst [vmem:[#allocation10] sm:$0xff] %v411
        %416 = vst [vmem:[#allocation10 + $0x8] sm:$0xff] %v412
        // Predicated region
        $region57: #{tpu_custom_call.1} parent=35 // pred_check
          %p417 = pneg %p125
        $region58: #{tpu_custom_call.1} parent=35 // pred_check_branch
          %419 = sbr.rel (%p417) target = $region60
        $region59: #{tpu_custom_call.1} parent=35 // pred_region
          %421 = vsyncadd [#allocation5], 0
          %s422 = sshll.u32 [#allocation10], 4
          %s423 = int_to_ptr.vmem [resolvable:$true] %s422
          %s424 = sshll.u32 %s4, 4
          %s425 = int_to_ptr.hbm [resolvable:$true] %s424
          %430 = dma.vmem_to_hbm [thread:$0]  %s423, 256, %s425, [#allocation5], 128, 128, 8
        $region60: #{tpu_custom_call.1} parent=35 // pred_fallthru
          _
        // Predicated region
        $region61: #{tpu_custom_call.1} parent=35 // pred_check
          %p431 = pneg %p125
        $region62: #{tpu_custom_call.1} parent=35 // pred_check_branch
          %433 = sbr.rel (%p431) target = $region64
        $region63: #{tpu_custom_call.1} parent=35 // pred_region
          %435 = dma.done [#allocation5], 256
        $region64: #{tpu_custom_call.1} parent=35 // pred_fallthru
          _
      $region36: #{tpu_custom_call.1} parent=5 // pred_fallthru
        _
      %p436 = scmp.le.s32.totalorder 2, %s13
      // Predicated region
      $region65: #{tpu_custom_call.1} parent=5 // pred_check
        %p437 = pneg %p436
      $region66: #{tpu_custom_call.1} parent=5 // pred_check_branch
        %439 = sbr.rel (%p437) target = $region68
      $region67: #{tpu_custom_call.1} parent=5 // pred_region
        %s440 = ssub.s32 %s13, 2
      $region68: #{tpu_custom_call.1} parent=5 // pred_fallthru
        _
    $region6: #{tpu_custom_call.1} parent=1 // loop_footer
      %s17 = sadd.s32 1, %s13
    $region7: #{tpu_custom_call.1} parent=1 // loop_footer_branch
      %12 = sbr.rel target = $region3
    $region8: #{tpu_custom_call.1} parent=1 // loop_exit
      _
    %441 = vsyncpa [#allocation4], 1
    %s442 = scalar_lea.sflag [#allocation4], 1
    %443 = vsyncpa %s442, 1
    %444 = vsyncpa [#allocation7], 1
    %445 = vsyncpa [#allocation5], 1
    %s446 = scalar_lea.sflag [#allocation5], 1
    %447 = vsyncpa %s446, 1

</llo_original>
